<compile_context>
chip_gen: v6e
topology: v6e:2x2x1
jax: 0.10.0
libtpu: 0.0.40
codegen_flags: <defaults>
</compile_context>

<pallas_src>
import functools

import jax
import jax.numpy as jnp
from jax import lax
from jax.experimental import pallas as pl
from jax.experimental.pallas import tpu as pltpu

ALPHA = 2.0
BETA = 4.0

LANES = 128
SUBLANES = 8
TARGET_TILE_ROWS = 8192  # 8192x128 f32 = 4 MiB per input block


def _pow(x, p):
    """Static power: avoid jnp.power's exp(log) lowering for integer exponents."""
    p = float(p)
    if p == 2.0:
        return x * x
    if p == 4.0:
        x2 = x * x
        return x2 * x2
    if p.is_integer() and p >= 0:
        return lax.integer_pow(x, int(p))
    return jnp.power(x, p)


def _num_tensorcores():
    """Best-effort count of TensorCores a single pallas_call can span (1 or 2)."""
    try:
        kind = str(jax.devices()[0].device_kind).lower()
    except Exception:  # pragma: no cover
        return 1
    # Single-TC chips, and chips that expose each TC as its own JAX device.
    if any(tag in kind for tag in ("lite", "v5e", "v6e", "v6 ", "v2", "v3")):
        return 1
    return 2  # v4 / v5p / v7x-style megacore


def _focal_kernel(pred_ref, gt_ref, loss_acc_ref, npos_acc_ref, *,
                  alpha, beta, n_valid, tiles_per_core, tile_rows, needs_mask):
    c = pl.program_id(0)   # core / parallel axis
    j = pl.program_id(1)   # reduction axis (tiles per core)

    @pl.when(j == 0)
    def _init():
        loss_acc_ref[...] = jnp.zeros_like(loss_acc_ref)
        npos_acc_ref[...] = jnp.zeros_like(npos_acc_ref)

    pred_raw = pred_ref[...].astype(jnp.float32)
    gt_raw = gt_ref[...].astype(jnp.float32)

    # pred transform + clamp (matches reference (p+1)/2 then clip to [1e-4, 1-1e-4]).
    pred = jnp.clip((pred_raw + 1.0) * 0.5, 0.0001, 1.0 - 0.0001)

    # gt affine transform eliminated:
    #   gt_t == 1.0        <=>  gt_raw == 1.0
    #   (1 - gt_t)^beta    ==   (1 - gt_raw)^beta * 2**-beta
    pos_mask = gt_raw == 1.0
    one_m_pred = 1.0 - pred

    # pred is clipped away from 0/1, so the reference's +1e-9 inside the logs
    # is dropped (differences are ~1e-6 relative; within tolerance).
    pos_loss = _pow(one_m_pred, alpha) * jnp.log(pred)
    neg_w = _pow(1.0 - gt_raw, beta) * (0.5 ** float(beta))
    neg_loss = _pow(pred, alpha) * jnp.log(one_m_pred) * neg_w

    loss_elem = jnp.where(pos_mask, pos_loss, neg_loss)
    pos_cnt = pos_mask.astype(jnp.float32)

    def _accumulate(le, pc):
        # Per-lane partial sums: pure vreg-wise VPU adds, no per-step XLU reduce.
        loss_acc_ref[...] += jnp.sum(
            le.reshape(tile_rows // SUBLANES, SUBLANES, LANES), axis=0)[None]
        npos_acc_ref[...] += jnp.sum(
            pc.reshape(tile_rows // SUBLANES, SUBLANES, LANES), axis=0)[None]

    if not needs_mask:
        _accumulate(loss_elem, pos_cnt)
    else:
        # Boundary handling: the global element index is derived from the
        # *un-clamped* tile index, so padding, the partial last tile and any
        # duplicated (clamped) tile all map to indices >= n_valid.
        t = c * tiles_per_core + j
        tile_elems = tile_rows * LANES
        is_full = (t + 1) * tile_elems <= n_valid

        @pl.when(is_full)
        def _interior():
            _accumulate(loss_elem, pos_cnt)

        @pl.when(jnp.logical_not(is_full))
        def _boundary():
            base = t * tile_elems
            row = lax.broadcasted_iota(jnp.int32, (tile_rows, LANES), 0)
            lane = lax.broadcasted_iota(jnp.int32, (tile_rows, LANES), 1)
            valid = (base + row * LANES + lane) < n_valid
            _accumulate(jnp.where(valid, loss_elem, 0.0),
                        jnp.where(valid, pos_cnt, 0.0))


def focal_loss(pred, gt, alpha=ALPHA, beta=BETA):
    """pred, gt: (B, C, H, W) arrays (any float dtype). Returns scalar f32 loss."""
    assert pred.shape == gt.shape
    n = int(pred.size)

    pred_flat = pred.reshape(-1)
    gt_flat = gt.reshape(-1)

    # Minimal alignment: pad only to a multiple of (8,128)=1024 elements so the
    # flat -> (rows, 128) reshape is a free metadata change.  Tiles do NOT have
    # to divide `rows`; the partial last tile is masked inside the kernel.
    align = SUBLANES * LANES
    n_pad = -(-n // align) * align
    if n_pad != n:
        # TODO(synk): a manual tail-tile DMA would avoid this whole-array copy
        # for shapes that are not 1024-element aligned.
        pred_flat = jnp.pad(pred_flat, (0, n_pad - n))
        gt_flat = jnp.pad(gt_flat, (0, n_pad - n))

    rows = n_pad // LANES                     # multiple of 8
    pred2d = pred_flat.reshape(rows, LANES)
    gt2d = gt_flat.reshape(rows, LANES)

    tile_rows = min(TARGET_TILE_ROWS, rows)   # multiple of 8
    tile_elems = tile_rows * LANES
    num_tiles = -(-rows // tile_rows)         # cdiv; last tile may be partial

    num_cores = _num_tensorcores() if num_tiles >= 2 else 1
    num_cores = min(num_cores, num_tiles)
    tiles_per_core = -(-num_tiles // num_cores)
    # Mask machinery is only traced in when the covered range exceeds n
    # (padding, a partial last tile, or a duplicated clamped tile).
    needs_mask = (num_cores * tiles_per_core * tile_elems) != n

    def data_map(c, j):
        # Clamp so a duplicated (odd-count) tile never reads OOB; its
        # contribution is masked to zero inside the kernel.
        return (jnp.minimum(c * tiles_per_core + j, num_tiles - 1), 0)

    tile_spec = pl.BlockSpec((tile_rows, LANES), data_map)
    acc_spec = pl.BlockSpec((1, SUBLANES, LANES), lambda c, j: (c, 0, 0))

    kernel = functools.partial(
        _focal_kernel, alpha=alpha, beta=beta, n_valid=n,
        tiles_per_core=tiles_per_core, tile_rows=tile_rows,
        needs_mask=needs_mask)

    # 2 inputs x 2 pipeline buffers x one tile (f32 upper bound) + headroom for
    # accumulators / internal scratch.  Stays well under v7x's 64 MiB VMEM.
    vmem_limit = min(2 * 2 * tile_elems * 4 + (8 << 20), 100 << 20)

    loss_parts, npos_parts = pl.pallas_call(
        kernel,
        out_shape=(
            jax.ShapeDtypeStruct((num_cores, SUBLANES, LANES), jnp.float32),
            jax.ShapeDtypeStruct((num_cores, SUBLANES, LANES), jnp.float32),
        ),
        grid_spec=pltpu.PrefetchScalarGridSpec(
            num_scalar_prefetch=0,
            grid=(num_cores, tiles_per_core),
            in_specs=[tile_spec, tile_spec],
            out_specs=(acc_spec, acc_spec),
        ),
        compiler_params=pltpu.CompilerParams(
            dimension_semantics=("parallel", "arbitrary"),
            vmem_limit_bytes=vmem_limit),
    )(pred2d, gt2d)

    total = jnp.sum(loss_parts)
    num_pos = jnp.sum(npos_parts)
    # When num_pos == 0 the positive part is exactly 0, so both reference
    # branches coincide with -total / max(num_pos, 1).
    return -total / jnp.maximum(num_pos, 1.0)


def _reference_focal_loss(pred, gt, alpha=ALPHA, beta=BETA):
    pred = (pred.astype(jnp.float32) + 1.0) / 2.0
    gt = (gt.astype(jnp.float32) + 1.0) / 2.0
    pred = jnp.clip(pred, 0.0001, 1.0 - 0.0001)
    pos_mask = (gt == 1.0)
    pos_loss = jnp.power(1.0 - pred, alpha) * jnp.log(pred + 1e-9)
    pos_loss = jnp.where(pos_mask, pos_loss, 0.0)
    neg_weights = jnp.power(1.0 - gt, beta)
    neg_loss = jnp.power(pred, alpha) * jnp.log(1.0 - pred + 1e-9)
    neg_loss = jnp.where(pos_mask, 0.0, neg_loss * neg_weights)
    num_pos = jnp.sum(pos_mask.astype(jnp.float32))
    pos_sum = jnp.sum(pos_loss)
    neg_sum = jnp.sum(neg_loss)
    return jnp.where(num_pos > 0.0,
                     -(pos_sum + neg_sum) / jnp.maximum(num_pos, 1.0),
                     -neg_sum)


if __name__ == "__main__":
    key = jax.random.PRNGKey(0)

    def make_case(key, shape, n_positives):
        k1, k2 = jax.random.split(key)
        pred = jax.random.uniform(k1, shape, jnp.float32, -1.0, 1.0)
        gt = jax.random.uniform(k2, shape, jnp.float32, -1.0, 0.999)
        gt_flat = gt.reshape(-1)
        for p in range(n_positives):
            idx = (p * 7919 + 13) % gt_flat.shape[0]
            gt_flat = gt_flat.at[idx].set(1.0)
        return pred, gt_flat.reshape(shape)

    k0, k1, k2, k3 = jax.random.split(key, 4)
    cases = [
        make_case(k0, (2, 4, 16, 16), 3),      # primary small case, aligned, 1 tile
        make_case(k1, (2, 3, 17, 19), 0),      # ragged -> pad + boundary mask, no positives
        make_case(k2, (2, 8, 320, 256), 5),    # multi-tile, partial last tile
        make_case(k3, (3, 8, 1024, 128), 7),   # 3 full tiles (dup-tile path on 2-TC chips)
    ]

    ok = True
    for pred, gt in cases:
        loss = jax.block_until_ready(focal_loss(pred, gt))
        ref = jax.block_until_ready(_reference_focal_loss(pred, gt))
        if not jnp.allclose(loss, ref, rtol=1e-4, atol=1e-5):
            ok = False
            print("MISMATCH", pred.shape, float(loss), float(ref))

    if ok:
        print("KERNEL_OK")
</pallas_src>

<mosaic_0001>
module attributes {stable_mosaic.version = 11 : i64} {
  func.func @_focal_kernel(%arg0: i32, %arg1: i32, %arg2: memref<16x128xf32, #tpu.memory_space<vmem>>, %arg3: memref<16x128xf32, #tpu.memory_space<vmem>>, %arg4: memref<1x8x128xf32, #tpu.memory_space<vmem>>, %arg5: memref<1x8x128xf32, #tpu.memory_space<vmem>>) attributes {dimension_semantics = [#tpu.dimension_semantics<parallel>, #tpu.dimension_semantics<arbitrary>], iteration_bounds = array<i64: 1, 1>, scalar_prefetch = 0 : i64, scratch_operands = 0 : i64, tpu.core_type = #tpu.core_type<tc>, window_params = [{transform_indices = @transform_0, window_bounds = array<i64: 16, 128>}, {transform_indices = @transform_1, window_bounds = array<i64: 16, 128>}, {transform_indices = @transform_2, window_bounds = array<i64: 1, 8, 128>}, {transform_indices = @transform_3, window_bounds = array<i64: 1, 8, 128>}]} {
    %c0_i32 = arith.constant 0 : i32
    %0 = arith.cmpi eq, %arg1, %c0_i32 : i32
    %1 = arith.extui %0 : i1 to i32
    %c0_i32_0 = arith.constant 0 : i32
    %2 = arith.cmpi ne, %1, %c0_i32_0 : i32
    scf.if %2 {
      %cst_25 = arith.constant 0.000000e+00 : f32
      %45 = vector.broadcast %cst_25 : f32 to vector<1x8x128xf32>
      %c0_26 = arith.constant 0 : index
      %c0_27 = arith.constant 0 : index
      %c0_28 = arith.constant 0 : index
      %46 = vector.load %arg4[%c0_26, %c0_27, %c0_28] : memref<1x8x128xf32, #tpu.memory_space<vmem>>, vector<1x8x128xf32>
      tpu.vector_store %arg4[%c0_26, %c0_27, %c0_28], %45 {strides = array<i32>} : memref<1x8x128xf32, #tpu.memory_space<vmem>>, vector<1x8x128xf32>,
      %cst_29 = arith.constant 0.000000e+00 : f32
      %47 = vector.broadcast %cst_29 : f32 to vector<1x8x128xf32>
      %c0_30 = arith.constant 0 : index
      %c0_31 = arith.constant 0 : index
      %c0_32 = arith.constant 0 : index
      %48 = vector.load %arg5[%c0_30, %c0_31, %c0_32] : memref<1x8x128xf32, #tpu.memory_space<vmem>>, vector<1x8x128xf32>
      tpu.vector_store %arg5[%c0_30, %c0_31, %c0_32], %47 {strides = array<i32>} : memref<1x8x128xf32, #tpu.memory_space<vmem>>, vector<1x8x128xf32>,
    } else {
    }
    %c0 = arith.constant 0 : index
    %c0_1 = arith.constant 0 : index
    %3 = vector.load %arg2[%c0, %c0_1] : memref<16x128xf32, #tpu.memory_space<vmem>>, vector<16x128xf32>
    %c0_2 = arith.constant 0 : index
    %c0_3 = arith.constant 0 : index
    %4 = vector.load %arg3[%c0_2, %c0_3] : memref<16x128xf32, #tpu.memory_space<vmem>>, vector<16x128xf32>
    %cst = arith.constant 1.000000e+00 : f32
    %5 = vector.broadcast %cst : f32 to vector<16x128xf32>
    %6 = arith.addf %3, %5 : vector<16x128xf32>
    %cst_4 = arith.constant 5.000000e-01 : f32
    %7 = vector.broadcast %cst_4 : f32 to vector<16x128xf32>
    %8 = arith.mulf %6, %7 : vector<16x128xf32>
    %cst_5 = arith.constant 9.99999974E-5 : f32
    %cst_6 = arith.constant 0.999899983 : f32
    %9 = vector.broadcast %cst_5 : f32 to vector<16x128xf32>
    %10 = arith.maximumf %9, %8 : vector<16x128xf32>
    %11 = vector.broadcast %cst_6 : f32 to vector<16x128xf32>
    %12 = arith.minimumf %11, %10 : vector<16x128xf32>
    %cst_7 = arith.constant 1.000000e+00 : f32
    %13 = vector.broadcast %cst_7 : f32 to vector<16x128xf32>
    %14 = arith.cmpf oeq, %4, %13 : vector<16x128xf32>
    %cst_8 = arith.constant 1.000000e+00 : f32
    %15 = vector.broadcast %cst_8 : f32 to vector<16x128xf32>
    %16 = arith.subf %15, %12 : vector<16x128xf32>
    %17 = arith.mulf %16, %16 : vector<16x128xf32>
    %18 = math.log %12 : vector<16x128xf32>
    %19 = arith.mulf %17, %18 : vector<16x128xf32>
    %cst_9 = arith.constant 1.000000e+00 : f32
    %20 = vector.broadcast %cst_9 : f32 to vector<16x128xf32>
    %21 = arith.subf %20, %4 : vector<16x128xf32>
    %22 = arith.mulf %21, %21 : vector<16x128xf32>
    %23 = arith.mulf %22, %22 : vector<16x128xf32>
    %cst_10 = arith.constant 6.250000e-02 : f32
    %24 = vector.broadcast %cst_10 : f32 to vector<16x128xf32>
    %25 = arith.mulf %23, %24 : vector<16x128xf32>
    %26 = arith.mulf %12, %12 : vector<16x128xf32>
    %27 = math.log %16 : vector<16x128xf32>
    %28 = arith.mulf %26, %27 : vector<16x128xf32>
    %29 = arith.mulf %28, %25 : vector<16x128xf32>
    %30 = arith.select %14, %19, %29 : vector<16x128xi1>, vector<16x128xf32>
    %31 = arith.extui %14 : vector<16x128xi1> to vector<16x128xi32>
    %32 = arith.sitofp %31 : vector<16x128xi32> to vector<16x128xf32>
    %c0_11 = arith.constant 0 : index
    %c0_12 = arith.constant 0 : index
    %c0_13 = arith.constant 0 : index
    %33 = vector.load %arg4[%c0_11, %c0_12, %c0_13] : memref<1x8x128xf32, #tpu.memory_space<vmem>>, vector<1x8x128xf32>
    %34 = vector.shape_cast %30 : vector<16x128xf32> to vector<2x8x128xf32>
    %cst_14 = arith.constant dense<0.000000e+00> : vector<8x128xf32>
    %35 = vector.multi_reduction <add>, %34, %cst_14 [0] : vector<2x8x128xf32> to vector<8x128xf32>
    %36 = vector.shape_cast %35 : vector<8x128xf32> to vector<1x8x128xf32>
    %37 = arith.addf %33, %36 : vector<1x8x128xf32>
    %c0_15 = arith.constant 0 : index
    %c0_16 = arith.constant 0 : index
    %c0_17 = arith.constant 0 : index
    %38 = vector.load %arg4[%c0_15, %c0_16, %c0_17] : memref<1x8x128xf32, #tpu.memory_space<vmem>>, vector<1x8x128xf32>
    tpu.vector_store %arg4[%c0_15, %c0_16, %c0_17], %37 {strides = array<i32>} : memref<1x8x128xf32, #tpu.memory_space<vmem>>, vector<1x8x128xf32>,
    %c0_18 = arith.constant 0 : index
    %c0_19 = arith.constant 0 : index
    %c0_20 = arith.constant 0 : index
    %39 = vector.load %arg5[%c0_18, %c0_19, %c0_20] : memref<1x8x128xf32, #tpu.memory_space<vmem>>, vector<1x8x128xf32>
    %40 = vector.shape_cast %32 : vector<16x128xf32> to vector<2x8x128xf32>
    %cst_21 = arith.constant dense<0.000000e+00> : vector<8x128xf32>
    %41 = vector.multi_reduction <add>, %40, %cst_21 [0] : vector<2x8x128xf32> to vector<8x128xf32>
    %42 = vector.shape_cast %41 : vector<8x128xf32> to vector<1x8x128xf32>
    %43 = arith.addf %39, %42 : vector<1x8x128xf32>
    %c0_22 = arith.constant 0 : index
    %c0_23 = arith.constant 0 : index
    %c0_24 = arith.constant 0 : index
    %44 = vector.load %arg5[%c0_22, %c0_23, %c0_24] : memref<1x8x128xf32, #tpu.memory_space<vmem>>, vector<1x8x128xf32>
    tpu.vector_store %arg5[%c0_22, %c0_23, %c0_24], %43 {strides = array<i32>} : memref<1x8x128xf32, #tpu.memory_space<vmem>>, vector<1x8x128xf32>,
    return
  }
  func.func @transform_0(%arg0: i32, %arg1: i32) -> (i32, i32) {
    %c1_i32 = arith.constant 1 : i32
    %0 = arith.muli %arg0, %c1_i32 : i32
    %1 = arith.addi %0, %arg1 : i32
    %c0_i32 = arith.constant 0 : i32
    %2 = arith.minsi %1, %c0_i32 : i32
    %c0_i32_0 = arith.constant 0 : i32
    %c0_i32_1 = arith.constant 0 : i32
    return %2, %c0_i32_0 : i32, i32
  }
  func.func @transform_1(%arg0: i32, %arg1: i32) -> (i32, i32) {
    %c1_i32 = arith.constant 1 : i32
    %0 = arith.muli %arg0, %c1_i32 : i32
    %1 = arith.addi %0, %arg1 : i32
    %c0_i32 = arith.constant 0 : i32
    %2 = arith.minsi %1, %c0_i32 : i32
    %c0_i32_0 = arith.constant 0 : i32
    %c0_i32_1 = arith.constant 0 : i32
    return %2, %c0_i32_0 : i32, i32
  }
  func.func @transform_2(%arg0: i32, %arg1: i32) -> (i32, i32, i32) {
    %c0_i32 = arith.constant 0 : i32
    %c0_i32_0 = arith.constant 0 : i32
    %c0_i32_1 = arith.constant 0 : i32
    return %arg0, %c0_i32, %c0_i32_0 : i32, i32, i32
  }
  func.func @transform_3(%arg0: i32, %arg1: i32) -> (i32, i32, i32) {
    %c0_i32 = arith.constant 0 : i32
    %c0_i32_0 = arith.constant 0 : i32
    %c0_i32_1 = arith.constant 0 : i32
    return %arg0, %c0_i32, %c0_i32_0 : i32, i32, i32
  }
}

</mosaic_0001>

<llo_original>
// kernel: tpu_custom_call.1
$region0: #{tpu_custom_call.1}
  #allocation0 [shape = 'u32[]', space=smem, size = 0x4, offset = 0x4, fixed_abs, tag = 'smem constant byte address 0x4 - core index']
  #allocation1 [shape = 'u32[144,128]{1,0:T(1,128)}', space=vmem, size = 0x12000, scoped, tag = 'internal scratch']
  %s0 = inlined_call_operand.hbm [shape: f32[16,128], index: 0, kind: input, shape index: {}]
  %s1 = inlined_call_operand.hbm [shape: f32[16,128], index: 1, kind: input, shape index: {}]
  %s2 = inlined_call_operand.hbm [shape: f32[1,8,128], index: 2, kind: output, shape index: {0}]
  %s3 = inlined_call_operand.hbm [shape: f32[1,8,128], index: 3, kind: output, shape index: {1}]
  %4 = xla_tuple %s2, %s3
  %s5 = sld [smem:[#allocation0]]
  $region38: #{tpu_custom_call.1} parent=0
    _
  %s7 = ssub.s32 1, %s5
  %s8 = scalar_select 0, %s7, %s5
  $region1: #{tpu_custom_call.1} parent=0
    #allocation2 [shape = 'u8[8192]{0}', space=vmem, size = 0x2000, scoped, tag = 'input window, operand 0, single buffered']
    #allocation3 [shape = 's32[1]{0}', space=sflag, size = 0x4, scoped, tag = 'scoped memory for tpu_custom_call.1']
    #allocation4 [shape = 's32[1]{0}', space=sflag, size = 0x4, scoped, tag = 'scoped memory for tpu_custom_call.1']
    #allocation5 [shape = 'u8[8192]{0}', space=vmem, size = 0x2000, scoped, tag = 'input window, operand 1, single buffered']
    #allocation6 [shape = 's32[1]{0}', space=sflag, size = 0x4, scoped, tag = 'scoped memory for tpu_custom_call.1']
    #allocation7 [shape = 'u8[4096]{0}', space=vmem, size = 0x1000, scoped, tag = 'output window, operand 0, single buffered']
    #allocation8 [shape = 'u8[4096]{0}', space=vmem, size = 0x1000, scoped, tag = 'output window, operand 1, single buffered']
    #allocation9 [shape = 's32[1]{0}', space=sflag, size = 0x4, scoped, tag = 'scoped memory for tpu_custom_call.1']
    %9 = vsyncpa [#allocation3], 0
    %10 = vsyncpa [#allocation6], 0
    %11 = vsyncpa [#allocation4], 0
    %12 = vsyncpa [#allocation9], 0
    // Predicated region
    $region2: #{tpu_custom_call.1} parent=1 // pred_check
      _
    $region3: #{tpu_custom_call.1} parent=1 // pred_check_branch
      %14 = sbr.rel (0) target = $region5
    $region4: #{tpu_custom_call.1} parent=1 // pred_region
      %s15 = sadd.s32 0, 0
      %p16 = scmp.lt.s32.totalorder %s15, 0
      %s17 = scalar_select %p16, %s15, 0
      %s18 = smul.u32 2, %s17
      %s20 = ssub.s32 256, 256
      %21 = vsyncadd [#allocation3], %s20
      %s22 = smul.addr %s18, 128
      %s23 = scalar_lea.hbm %s0, %s22
      %s24 = sshll.u32 [#allocation2], 4
      %s25 = int_to_ptr.vmem [resolvable:$true] %s24
      %30 = dma.hbm_to_vmem [thread:$0]  %s23, 256, %s25, [#allocation3], 128, 128, 8
    $region5: #{tpu_custom_call.1} parent=1 // pred_fallthru
      _
    // Predicated region
    $region6: #{tpu_custom_call.1} parent=1 // pred_check
      _
    $region7: #{tpu_custom_call.1} parent=1 // pred_check_branch
      %32 = sbr.rel (0) target = $region9
    $region8: #{tpu_custom_call.1} parent=1 // pred_region
      %s33 = sadd.s32 0, 0
      %p34 = scmp.lt.s32.totalorder %s33, 0
      %s35 = scalar_select %p34, %s33, 0
      %s36 = smul.u32 2, %s35
      %s38 = ssub.s32 256, 256
      %39 = vsyncadd [#allocation6], %s38
      %s40 = smul.addr %s36, 128
      %s41 = scalar_lea.hbm %s1, %s40
      %s42 = sshll.u32 [#allocation5], 4
      %s43 = int_to_ptr.vmem [resolvable:$true] %s42
      %48 = dma.hbm_to_vmem [thread:$0]  %s41, 256, %s43, [#allocation6], 128, 128, 8
    $region9: #{tpu_custom_call.1} parent=1 // pred_fallthru
      _
    // Predicated region
    $region10: #{tpu_custom_call.1} parent=1 // pred_check
      _
    $region11: #{tpu_custom_call.1} parent=1 // pred_check_branch
      %50 = sbr.rel (0) target = $region13
    $region12: #{tpu_custom_call.1} parent=1 // pred_region
      %51 = dma.done [#allocation3], 256
    $region13: #{tpu_custom_call.1} parent=1 // pred_fallthru
      _
    // Predicated region
    $region14: #{tpu_custom_call.1} parent=1 // pred_check
      _
    $region15: #{tpu_custom_call.1} parent=1 // pred_check_branch
      %53 = sbr.rel (0) target = $region17
    $region16: #{tpu_custom_call.1} parent=1 // pred_region
      %54 = dma.done [#allocation6], 256
    $region17: #{tpu_custom_call.1} parent=1 // pred_fallthru
      _
    %s55 = sadd.s32 0, 0
    %p56 = scmp.lt.s32.totalorder %s55, 0
    %s57 = scalar_select %p56, %s55, 0
    %s58 = smul.u32 2, %s57
    %s59 = sadd.s32 0, 0
    %p60 = scmp.lt.s32.totalorder %s59, 0
    %s61 = scalar_select %p60, %s59, 0
    %s62 = smul.u32 2, %s61
    %p63 = scmp.eq.s32.totalorder 0, 0
    // Predicated region
    $region18: #{tpu_custom_call.1} parent=1 // pred_check
      %p64 = pneg %p63
    $region19: #{tpu_custom_call.1} parent=1 // pred_check_branch
      %66 = sbr.rel (%p64) target = $region21
    $region20: #{tpu_custom_call.1} parent=1 // pred_region
      %67 = vst [vmem:[#allocation7] sm:$0xff] 0.0
      %68 = vst [vmem:[#allocation8] sm:$0xff] 0.0
    $region21: #{tpu_custom_call.1} parent=1 // pred_fallthru
      _
    %v69 = vld [vmem:[#allocation2] sm:$0xff]
    %v70 = vld [vmem:[#allocation2 + $0x8] sm:$0xff]
    %v71 = vld [vmem:[#allocation5] sm:$0xff]
    %v72 = vld [vmem:[#allocation5 + $0x8] sm:$0xff]
    %v73 = vadd.f32 %v69, 1.0
    %v74 = vadd.f32 %v70, 1.0
    %v75 = vmul.f32 %v73, 0.5
    %v76 = vmul.f32 %v74, 0.5
    %v77 = vmax.f32 %v75, 0.0001
    %v78 = vmax.f32 %v76, 0.0001
    %v79 = vmin.f32 %v77, 0.9999
    %v80 = vmin.f32 %v78, 0.9999
    %vm81 = vcmp.eq.f32.partialorder %v71, 1.0
    %vm82 = vcmp.eq.f32.partialorder %v72, 1.0
    %v83 = vsub.f32 1.0, %v79
    %v84 = vsub.f32 1.0, %v80
    %v85 = vmul.f32 %v83, %v83
    %v86 = vmul.f32 %v84, %v84
    %v87 = vlog2.pop %v79
    %v88 = vmul.f32 %v87, 0.6931472
    %v89 = vlog2.pop %v80
    %v90 = vmul.f32 %v89, 0.6931472
    %v91 = vmul.f32 %v85, %v88
    %v92 = vmul.f32 %v86, %v90
    %v93 = vsub.f32 1.0, %v71
    %v94 = vsub.f32 1.0, %v72
    %v95 = vmul.f32 %v93, %v93
    %v96 = vmul.f32 %v94, %v94
    %v97 = vmul.f32 %v95, %v95
    %v98 = vmul.f32 %v96, %v96
    %v99 = vmul.f32 %v97, 0.0625
    %v100 = vmul.f32 %v98, 0.0625
    %v101 = vmul.f32 %v79, %v79
    %v102 = vmul.f32 %v80, %v80
    %v103 = vlog2.pop %v83
    %v104 = vmul.f32 %v103, 0.6931472
    %v105 = vlog2.pop %v84
    %v106 = vmul.f32 %v105, 0.6931472
    %v107 = vmul.f32 %v101, %v104
    %v108 = vmul.f32 %v102, %v106
    %v109 = vmul.f32 %v107, %v99
    %v110 = vmul.f32 %v108, %v100
    %v111 = vsel %vm81, %v91, %v109
    %v112 = vsel %vm82, %v92, %v110
    %v113 = vsel %vm81, 1, 0
    %v114 = vsel %vm82, 1, 0
    %v115 = vcvt.s32.f32 %v113
    %v116 = vcvt.s32.f32 %v114
    %v117 = vld [vmem:[#allocation7] sm:$0xff]
    %v118 = vadd.f32 %v111, %v112
    %v119 = vadd.f32 %v117, %v118
    %120 = vst [vmem:[#allocation7] sm:$0xff] %v119
    %v121 = vld [vmem:[#allocation8] sm:$0xff]
    %v122 = vadd.f32 %v115, %v116
    %v123 = vadd.f32 %v121, %v122
    %124 = vst [vmem:[#allocation8] sm:$0xff] %v123
    // Predicated region
    $region22: #{tpu_custom_call.1} parent=1 // pred_check
      _
    $region23: #{tpu_custom_call.1} parent=1 // pred_check_branch
      %126 = sbr.rel (0) target = $region25
    $region24: #{tpu_custom_call.1} parent=1 // pred_region
      %s128 = ssub.s32 128, 128
      %129 = vsyncadd [#allocation4], %s128
      %s131 = sshll.u32 [#allocation7], 4
      %s132 = int_to_ptr.vmem [resolvable:$true] %s131
      %134 = dma.vmem_to_hbm [thread:$0]  %s132, 128, %s2, [#allocation4]
    $region25: #{tpu_custom_call.1} parent=1 // pred_fallthru
      _
    // Predicated region
    $region26: #{tpu_custom_call.1} parent=1 // pred_check
      _
    $region27: #{tpu_custom_call.1} parent=1 // pred_check_branch
      %136 = sbr.rel (0) target = $region29
    $region28: #{tpu_custom_call.1} parent=1 // pred_region
      %s138 = ssub.s32 128, 128
      %139 = vsyncadd [#allocation9], %s138
      %s141 = sshll.u32 [#allocation8], 4
      %s142 = int_to_ptr.vmem [resolvable:$true] %s141
      %144 = dma.vmem_to_hbm [thread:$0]  %s142, 128, %s3, [#allocation9]
    $region29: #{tpu_custom_call.1} parent=1 // pred_fallthru
      _
    // Predicated region
    $region30: #{tpu_custom_call.1} parent=1 // pred_check
      _
    $region31: #{tpu_custom_call.1} parent=1 // pred_check_branch
      %146 = sbr.rel (0) target = $region33
    $region32: #{tpu_custom_call.1} parent=1 // pred_region
      %147 = dma.done [#allocation4], 128
    $region33: #{tpu_custom_call.1} parent=1 // pred_fallthru
      _
    // Predicated region
    $region34: #{tpu_custom_call.1} parent=1 // pred_check
      _
    $region35: #{tpu_custom_call.1} parent=1 // pred_check_branch
      %149 = sbr.rel (0) target = $region37
    $region36: #{tpu_custom_call.1} parent=1 // pred_region
      %150 = dma.done [#allocation9], 128
    $region37: #{tpu_custom_call.1} parent=1 // pred_fallthru
      _
    %151 = vsyncpa [#allocation3], 1
    %152 = vsyncpa [#allocation6], 1
    %153 = vsyncpa [#allocation4], 1
    %154 = vsyncpa [#allocation9], 1

</llo_original>
